<compile_context>
chip_gen: v7x
topology: tpu7x:2x2x1
jax: 0.10.0
libtpu: 0.0.40
codegen_flags: <defaults>
</compile_context>

<pallas_src>
import math

import jax
import jax.numpy as jnp
from jax.experimental import pallas as pl
from jax.experimental.pallas import tpu as pltpu


def _round_up(x, m):
    return ((x + m - 1) // m) * m


def _make_stacked_kernel(num_layers, hidden):
    """Builds a kernel running the full LSTM stack on one (block_b, *) batch tile."""

    def kernel(*refs):
        x_ref, h0_ref, c0_ref = refs[0], refs[1], refs[2]
        wih_refs = refs[3:3 + num_layers]                  # (in_l, 4H) fused, pre-transposed
        whh_refs = refs[3 + num_layers:3 + 2 * num_layers]  # (H, 4H)
        hs_ref, cs_ref = refs[3 + 2 * num_layers], refs[4 + 2 * num_layers]

        inp = x_ref[...]
        for l in range(num_layers):
            h = h0_ref[l]
            c = c0_ref[l].astype(jnp.float32)

            # Two wide MXU matmuls -> fused (block_b, 4H) pre-activation, f32 acc.
            pre = (jnp.dot(inp, wih_refs[l][...], preferred_element_type=jnp.float32)
                   + jnp.dot(h, whh_refs[l][...], preferred_element_type=jnp.float32))

            # Consume gates as they are produced (keeps peak live intermediates low).
            c_new = (jax.nn.sigmoid(pre[:, hidden:2 * hidden]) * c
                     + jax.nn.sigmoid(pre[:, 0:hidden])
                     * jnp.tanh(pre[:, 2 * hidden:3 * hidden]))
            h_new = jax.nn.sigmoid(pre[:, 3 * hidden:4 * hidden]) * jnp.tanh(c_new)

            hs_ref[l] = h_new.astype(hs_ref.dtype)
            cs_ref[l] = c_new.astype(cs_ref.dtype)
            # TODO(synk): training-mode nn.Dropout between layers (stochastic mask
            # + 1/(1-p) scale) is not implemented; forward matches eval mode.
            inp = h_new.astype(h0_ref.dtype)

    return kernel


def pack_lstm_params(w_ih_list, w_hh_list):
    """One-time repack (hoisted out of the per-call path).

    PyTorch layout (4H, in) / (4H, H), gate blocks [i; f; g; o] along rows, is
    transposed to fused (in, 4H) / (H, 4H) so the kernel issues two wide MXU
    matmuls per layer and slices gates with static lane offsets.
    """
    return ([jnp.asarray(w).T for w in w_ih_list],
            [jnp.asarray(w).T for w in w_hh_list])


def stacked_lstm_cell(x, h0, c0, wih_packed, whh_packed, *,
                      block_b_max=256, vmem_budget_bytes=40 * 1024 * 1024):
    """Forward pass of StackedLSTMCell (eval mode).

    x:  (B, input_size)
    h0: (num_layers, B, hidden), c0: (num_layers, B, hidden)
    wih_packed[l]: (in_l, 4*hidden)  (from pack_lstm_params)
    whh_packed[l]: (hidden, 4*hidden)
    Returns (output, (hs, cs)) with output=(B, hidden), hs=cs=(num_layers, B, hidden).
    """
    B, input_size = x.shape
    num_layers, _, hidden = h0.shape
    assert c0.shape == h0.shape
    assert len(wih_packed) == num_layers and len(whh_packed) == num_layers
    assert wih_packed[0].shape == (input_size, 4 * hidden)
    for l in range(1, num_layers):
        assert wih_packed[l].shape == (hidden, 4 * hidden)
    for l in range(num_layers):
        assert whh_packed[l].shape == (hidden, 4 * hidden)

    itemsize = jnp.dtype(x.dtype).itemsize
    weight_bytes = sum(int(w.size) * jnp.dtype(w.dtype).itemsize
                       for w in list(wih_packed) + list(whh_packed))

    # ---- Batch tiling: pad only to a multiple of 8, balanced tiles, and at
    # least 2 tiles when B allows (so v7x's two TensorCores both get work). ----
    B8 = _round_up(B, 8)
    min_tiles = 2 if B8 >= 16 else 1
    n_tiles = max(-(-B8 // block_b_max), min_tiles)
    block_b = _round_up(-(-B8 // n_tiles), 8)

    # Shrink the batch tile until the estimated working set fits the VMEM budget
    # (weights counted double-buffered; state tiles double-buffered by pipelining).
    def vmem_estimate(bb):
        tiles = (bb * input_size + 4 * num_layers * bb * hidden) * itemsize * 2
        interm = bb * 4 * hidden * 4 * 3  # fused pre-activation + gate temporaries (f32)
        return 2 * weight_bytes + tiles + interm

    while block_b > 8 and vmem_estimate(block_b) > vmem_budget_bytes:
        block_b = _round_up(max(block_b // 2, 8), 8)

    n_tiles = -(-B8 // block_b)
    B_pad = n_tiles * block_b
    if B_pad != B:
        x = jnp.pad(x, ((0, B_pad - B), (0, 0)))
        h0 = jnp.pad(h0, ((0, 0), (0, B_pad - B), (0, 0)))
        c0 = jnp.pad(c0, ((0, 0), (0, B_pad - B), (0, 0)))

    # ---- Advisory cost estimate for the XLA scheduler. ----
    flops = 0
    in_sz = input_size
    for _ in range(num_layers):
        flops += 2 * B_pad * 4 * hidden * (in_sz + hidden)
        in_sz = hidden
    io_bytes = ((B_pad * input_size + 4 * num_layers * B_pad * hidden) * itemsize
                + weight_bytes)
    cost = pl.CostEstimate(flops=flops,
                           transcendentals=5 * num_layers * B_pad * hidden,
                           bytes_accessed=io_bytes)

    in_specs = [
        pl.BlockSpec((block_b, input_size), lambda i: (i, 0)),
        pl.BlockSpec((num_layers, block_b, hidden), lambda i: (0, i, 0)),
        pl.BlockSpec((num_layers, block_b, hidden), lambda i: (0, i, 0)),
    ]
    # Weights: constant index_map -> DMA'd once, resident in VMEM across the grid.
    for w in list(wih_packed) + list(whh_packed):
        in_specs.append(pl.BlockSpec(w.shape, lambda i: (0, 0)))

    hs, cs = pl.pallas_call(
        _make_stacked_kernel(num_layers, hidden),
        out_shape=(
            jax.ShapeDtypeStruct((num_layers, B_pad, hidden), h0.dtype),
            jax.ShapeDtypeStruct((num_layers, B_pad, hidden), c0.dtype),
        ),
        grid_spec=pltpu.PrefetchScalarGridSpec(
            num_scalar_prefetch=0,
            grid=(n_tiles,),
            in_specs=in_specs,
            out_specs=(
                pl.BlockSpec((num_layers, block_b, hidden), lambda i: (0, i, 0)),
                pl.BlockSpec((num_layers, block_b, hidden), lambda i: (0, i, 0)),
            ),
        ),
        compiler_params=pltpu.CompilerParams(
            dimension_semantics=("parallel",),          # batch tiles shard across v7x TCs
            vmem_limit_bytes=48 * 1024 * 1024,          # leave headroom on v7x (64 MiB phys)
        ),
        cost_estimate=cost,
    )(x, h0, c0, *wih_packed, *whh_packed)

    hs = hs[:, :B]
    cs = cs[:, :B]
    return hs[-1], (hs, cs)


def _reference_stacked(x, h0, c0, w_ih_list, w_hh_list):
    """Pure-JAX reference matching PyTorch StackedLSTMCell in eval mode."""
    num_layers = h0.shape[0]
    hs, cs = [], []
    inp = x
    for i in range(num_layers):
        gates = inp @ w_ih_list[i].T + h0[i] @ w_hh_list[i].T
        ii, ff, gg, oo = jnp.split(gates, 4, axis=-1)
        ii = jax.nn.sigmoid(ii)
        ff = jax.nn.sigmoid(ff)
        gg = jnp.tanh(gg)
        oo = jax.nn.sigmoid(oo)
        c_new = ff * c0[i] + ii * gg
        h_new = oo * jnp.tanh(c_new)
        inp = h_new
        hs.append(h_new)
        cs.append(c_new)
    return inp, jnp.stack(hs), jnp.stack(cs)


if __name__ == "__main__":
    key = jax.random.PRNGKey(0)
    num_layers, batch, input_size, rnn_size = 2, 2, 32, 32

    keys = jax.random.split(key, 3 + 2 * num_layers)
    x = jax.random.normal(keys[0], (batch, input_size), dtype=jnp.float32)
    h0 = jax.random.normal(keys[1], (num_layers, batch, rnn_size), dtype=jnp.float32)
    c0 = jax.random.normal(keys[2], (num_layers, batch, rnn_size), dtype=jnp.float32)

    # Deterministic weights matching nn.LSTMCell init range (bias=False), PyTorch layout.
    scale = 1.0 / math.sqrt(rnn_size)
    w_ih_list, w_hh_list = [], []
    in_sz = input_size
    for i in range(num_layers):
        w_ih_list.append(jax.random.uniform(
            keys[3 + 2 * i], (4 * rnn_size, in_sz), jnp.float32, -scale, scale))
        w_hh_list.append(jax.random.uniform(
            keys[4 + 2 * i], (4 * rnn_size, rnn_size), jnp.float32, -scale, scale))
        in_sz = rnn_size

    # One-time parameter repack (hoisted out of the call path).
    wih_packed, whh_packed = pack_lstm_params(w_ih_list, w_hh_list)

    out, (hs, cs) = stacked_lstm_cell(x, h0, c0, wih_packed, whh_packed)
    jax.block_until_ready((out, hs, cs))

    out_ref, hs_ref, cs_ref = _reference_stacked(x, h0, c0, w_ih_list, w_hh_list)
    assert jnp.allclose(out, out_ref, atol=1e-5, rtol=1e-5), "output mismatch"
    assert jnp.allclose(hs, hs_ref, atol=1e-5, rtol=1e-5), "hs mismatch"
    assert jnp.allclose(cs, cs_ref, atol=1e-5, rtol=1e-5), "cs mismatch"
    print("KERNEL_OK")
</pallas_src>

<mosaic_0001>
module attributes {stable_mosaic.version = 11 : i64} {
  func.func @kernel(%arg0: i32, %arg1: memref<8x32xf32, #tpu.memory_space<vmem>>, %arg2: memref<2x8x32xf32, #tpu.memory_space<vmem>>, %arg3: memref<2x8x32xf32, #tpu.memory_space<vmem>>, %arg4: memref<32x128xf32, #tpu.memory_space<vmem>>, %arg5: memref<32x128xf32, #tpu.memory_space<vmem>>, %arg6: memref<32x128xf32, #tpu.memory_space<vmem>>, %arg7: memref<32x128xf32, #tpu.memory_space<vmem>>, %arg8: memref<2x8x32xf32, #tpu.memory_space<vmem>>, %arg9: memref<2x8x32xf32, #tpu.memory_space<vmem>>) attributes {dimension_semantics = [#tpu.dimension_semantics<parallel>], iteration_bounds = array<i64: 1>, scalar_prefetch = 0 : i64, scratch_operands = 0 : i64, tpu.core_type = #tpu.core_type<tc>, window_params = [{transform_indices = @transform_0, window_bounds = array<i64: 8, 32>}, {transform_indices = @transform_1, window_bounds = array<i64: 2, 8, 32>}, {transform_indices = @transform_2, window_bounds = array<i64: 2, 8, 32>}, {pipeline_mode = #tpu.pipeline_mode<synchronous>, transform_indices = @transform_3, window_bounds = array<i64: 32, 128>}, {pipeline_mode = #tpu.pipeline_mode<synchronous>, transform_indices = @transform_4, window_bounds = array<i64: 32, 128>}, {pipeline_mode = #tpu.pipeline_mode<synchronous>, transform_indices = @transform_5, window_bounds = array<i64: 32, 128>}, {pipeline_mode = #tpu.pipeline_mode<synchronous>, transform_indices = @transform_6, window_bounds = array<i64: 32, 128>}, {transform_indices = @transform_7, window_bounds = array<i64: 2, 8, 32>}, {transform_indices = @transform_8, window_bounds = array<i64: 2, 8, 32>}]} {
    %c0 = arith.constant 0 : index
    %c0_0 = arith.constant 0 : index
    %0 = vector.load %arg1[%c0, %c0_0] : memref<8x32xf32, #tpu.memory_space<vmem>>, vector<8x32xf32>
    %c0_1 = arith.constant 0 : index
    %c0_2 = arith.constant 0 : index
    %c0_3 = arith.constant 0 : index
    %1 = vector.load %arg2[%c0_1, %c0_2, %c0_3] : memref<2x8x32xf32, #tpu.memory_space<vmem>>, vector<1x8x32xf32>
    %2 = vector.shape_cast %1 : vector<1x8x32xf32> to vector<8x32xf32>
    %c0_4 = arith.constant 0 : index
    %c0_5 = arith.constant 0 : index
    %c0_6 = arith.constant 0 : index
    %3 = vector.load %arg3[%c0_4, %c0_5, %c0_6] : memref<2x8x32xf32, #tpu.memory_space<vmem>>, vector<1x8x32xf32>
    %4 = vector.shape_cast %3 : vector<1x8x32xf32> to vector<8x32xf32>
    %c0_7 = arith.constant 0 : index
    %c0_8 = arith.constant 0 : index
    %5 = vector.load %arg4[%c0_7, %c0_8] : memref<32x128xf32, #tpu.memory_space<vmem>>, vector<32x128xf32>
    %cst = arith.constant dense<0.000000e+00> : vector<8x128xf32>
    %6 = tpu.matmul %0, %5, %cst {dimension_numbers = #tpu.dot_dimension_numbers<[1], [0], [0], [1], [0, 0, 1, 1], [], []>} : vector<8x32xf32>, vector<32x128xf32>, vector<8x128xf32> -> vector<8x128xf32>
    %c0_9 = arith.constant 0 : index
    %c0_10 = arith.constant 0 : index
    %7 = vector.load %arg6[%c0_9, %c0_10] : memref<32x128xf32, #tpu.memory_space<vmem>>, vector<32x128xf32>
    %cst_11 = arith.constant dense<0.000000e+00> : vector<8x128xf32>
    %8 = tpu.matmul %2, %7, %cst_11 {dimension_numbers = #tpu.dot_dimension_numbers<[1], [0], [0], [1], [0, 0, 1, 1], [], []>} : vector<8x32xf32>, vector<32x128xf32>, vector<8x128xf32> -> vector<8x128xf32>
    %9 = arith.addf %6, %8 : vector<8x128xf32>
    %10 = vector.extract_strided_slice %9 {offsets = [0, 32], sizes = [8, 32], strides = [1, 1]} : vector<8x128xf32> to vector<8x32xf32>
    %11 = arith.negf %10 : vector<8x32xf32>
    %12 = math.exp %11 : vector<8x32xf32>
    %cst_12 = arith.constant 1.000000e+00 : f32
    %13 = vector.broadcast %cst_12 : f32 to vector<8x32xf32>
    %14 = arith.addf %13, %12 : vector<8x32xf32>
    %15 = arith.divf %13, %14 : vector<8x32xf32>
    %16 = arith.mulf %15, %4 : vector<8x32xf32>
    %17 = vector.extract_strided_slice %9 {offsets = [0, 0], sizes = [8, 32], strides = [1, 1]} : vector<8x128xf32> to vector<8x32xf32>
    %18 = arith.negf %17 : vector<8x32xf32>
    %19 = math.exp %18 : vector<8x32xf32>
    %cst_13 = arith.constant 1.000000e+00 : f32
    %20 = vector.broadcast %cst_13 : f32 to vector<8x32xf32>
    %21 = arith.addf %20, %19 : vector<8x32xf32>
    %22 = arith.divf %20, %21 : vector<8x32xf32>
    %23 = vector.extract_strided_slice %9 {offsets = [0, 64], sizes = [8, 32], strides = [1, 1]} : vector<8x128xf32> to vector<8x32xf32>
    %24 = math.tanh %23 : vector<8x32xf32>
    %25 = arith.mulf %22, %24 : vector<8x32xf32>
    %26 = arith.addf %16, %25 : vector<8x32xf32>
    %27 = vector.extract_strided_slice %9 {offsets = [0, 96], sizes = [8, 32], strides = [1, 1]} : vector<8x128xf32> to vector<8x32xf32>
    %28 = arith.negf %27 : vector<8x32xf32>
    %29 = math.exp %28 : vector<8x32xf32>
    %cst_14 = arith.constant 1.000000e+00 : f32
    %30 = vector.broadcast %cst_14 : f32 to vector<8x32xf32>
    %31 = arith.addf %30, %29 : vector<8x32xf32>
    %32 = arith.divf %30, %31 : vector<8x32xf32>
    %33 = math.tanh %26 : vector<8x32xf32>
    %34 = arith.mulf %32, %33 : vector<8x32xf32>
    %c0_15 = arith.constant 0 : index
    %c0_16 = arith.constant 0 : index
    %c0_17 = arith.constant 0 : index
    %35 = vector.load %arg8[%c0_15, %c0_16, %c0_17] : memref<2x8x32xf32, #tpu.memory_space<vmem>>, vector<1x8x32xf32>
    %36 = vector.shape_cast %35 : vector<1x8x32xf32> to vector<8x32xf32>
    %37 = vector.shape_cast %34 : vector<8x32xf32> to vector<1x8x32xf32>
    tpu.vector_store %arg8[%c0_15, %c0_16, %c0_17], %37 {strides = array<i32>} : memref<2x8x32xf32, #tpu.memory_space<vmem>>, vector<1x8x32xf32>,
    %c0_18 = arith.constant 0 : index
    %c0_19 = arith.constant 0 : index
    %c0_20 = arith.constant 0 : index
    %38 = vector.load %arg9[%c0_18, %c0_19, %c0_20] : memref<2x8x32xf32, #tpu.memory_space<vmem>>, vector<1x8x32xf32>
    %39 = vector.shape_cast %38 : vector<1x8x32xf32> to vector<8x32xf32>
    %40 = vector.shape_cast %26 : vector<8x32xf32> to vector<1x8x32xf32>
    tpu.vector_store %arg9[%c0_18, %c0_19, %c0_20], %40 {strides = array<i32>} : memref<2x8x32xf32, #tpu.memory_space<vmem>>, vector<1x8x32xf32>,
    %c1 = arith.constant 1 : index
    %c0_21 = arith.constant 0 : index
    %c0_22 = arith.constant 0 : index
    %41 = vector.load %arg2[%c1, %c0_21, %c0_22] : memref<2x8x32xf32, #tpu.memory_space<vmem>>, vector<1x8x32xf32>
    %42 = vector.shape_cast %41 : vector<1x8x32xf32> to vector<8x32xf32>
    %c1_23 = arith.constant 1 : index
    %c0_24 = arith.constant 0 : index
    %c0_25 = arith.constant 0 : index
    %43 = vector.load %arg3[%c1_23, %c0_24, %c0_25] : memref<2x8x32xf32, #tpu.memory_space<vmem>>, vector<1x8x32xf32>
    %44 = vector.shape_cast %43 : vector<1x8x32xf32> to vector<8x32xf32>
    %c0_26 = arith.constant 0 : index
    %c0_27 = arith.constant 0 : index
    %45 = vector.load %arg5[%c0_26, %c0_27] : memref<32x128xf32, #tpu.memory_space<vmem>>, vector<32x128xf32>
    %cst_28 = arith.constant dense<0.000000e+00> : vector<8x128xf32>
    %46 = tpu.matmul %34, %45, %cst_28 {dimension_numbers = #tpu.dot_dimension_numbers<[1], [0], [0], [1], [0, 0, 1, 1], [], []>} : vector<8x32xf32>, vector<32x128xf32>, vector<8x128xf32> -> vector<8x128xf32>
    %c0_29 = arith.constant 0 : index
    %c0_30 = arith.constant 0 : index
    %47 = vector.load %arg7[%c0_29, %c0_30] : memref<32x128xf32, #tpu.memory_space<vmem>>, vector<32x128xf32>
    %cst_31 = arith.constant dense<0.000000e+00> : vector<8x128xf32>
    %48 = tpu.matmul %42, %47, %cst_31 {dimension_numbers = #tpu.dot_dimension_numbers<[1], [0], [0], [1], [0, 0, 1, 1], [], []>} : vector<8x32xf32>, vector<32x128xf32>, vector<8x128xf32> -> vector<8x128xf32>
    %49 = arith.addf %46, %48 : vector<8x128xf32>
    %50 = vector.extract_strided_slice %49 {offsets = [0, 32], sizes = [8, 32], strides = [1, 1]} : vector<8x128xf32> to vector<8x32xf32>
    %51 = arith.negf %50 : vector<8x32xf32>
    %52 = math.exp %51 : vector<8x32xf32>
    %cst_32 = arith.constant 1.000000e+00 : f32
    %53 = vector.broadcast %cst_32 : f32 to vector<8x32xf32>
    %54 = arith.addf %53, %52 : vector<8x32xf32>
    %55 = arith.divf %53, %54 : vector<8x32xf32>
    %56 = arith.mulf %55, %44 : vector<8x32xf32>
    %57 = vector.extract_strided_slice %49 {offsets = [0, 0], sizes = [8, 32], strides = [1, 1]} : vector<8x128xf32> to vector<8x32xf32>
    %58 = arith.negf %57 : vector<8x32xf32>
    %59 = math.exp %58 : vector<8x32xf32>
    %cst_33 = arith.constant 1.000000e+00 : f32
    %60 = vector.broadcast %cst_33 : f32 to vector<8x32xf32>
    %61 = arith.addf %60, %59 : vector<8x32xf32>
    %62 = arith.divf %60, %61 : vector<8x32xf32>
    %63 = vector.extract_strided_slice %49 {offsets = [0, 64], sizes = [8, 32], strides = [1, 1]} : vector<8x128xf32> to vector<8x32xf32>
    %64 = math.tanh %63 : vector<8x32xf32>
    %65 = arith.mulf %62, %64 : vector<8x32xf32>
    %66 = arith.addf %56, %65 : vector<8x32xf32>
    %67 = vector.extract_strided_slice %49 {offsets = [0, 96], sizes = [8, 32], strides = [1, 1]} : vector<8x128xf32> to vector<8x32xf32>
    %68 = arith.negf %67 : vector<8x32xf32>
    %69 = math.exp %68 : vector<8x32xf32>
    %cst_34 = arith.constant 1.000000e+00 : f32
    %70 = vector.broadcast %cst_34 : f32 to vector<8x32xf32>
    %71 = arith.addf %70, %69 : vector<8x32xf32>
    %72 = arith.divf %70, %71 : vector<8x32xf32>
    %73 = math.tanh %66 : vector<8x32xf32>
    %74 = arith.mulf %72, %73 : vector<8x32xf32>
    %c1_35 = arith.constant 1 : index
    %c0_36 = arith.constant 0 : index
    %c0_37 = arith.constant 0 : index
    %75 = vector.load %arg8[%c1_35, %c0_36, %c0_37] : memref<2x8x32xf32, #tpu.memory_space<vmem>>, vector<1x8x32xf32>
    %76 = vector.shape_cast %75 : vector<1x8x32xf32> to vector<8x32xf32>
    %77 = vector.shape_cast %74 : vector<8x32xf32> to vector<1x8x32xf32>
    tpu.vector_store %arg8[%c1_35, %c0_36, %c0_37], %77 {strides = array<i32>} : memref<2x8x32xf32, #tpu.memory_space<vmem>>, vector<1x8x32xf32>,
    %c1_38 = arith.constant 1 : index
    %c0_39 = arith.constant 0 : index
    %c0_40 = arith.constant 0 : index
    %78 = vector.load %arg9[%c1_38, %c0_39, %c0_40] : memref<2x8x32xf32, #tpu.memory_space<vmem>>, vector<1x8x32xf32>
    %79 = vector.shape_cast %78 : vector<1x8x32xf32> to vector<8x32xf32>
    %80 = vector.shape_cast %66 : vector<8x32xf32> to vector<1x8x32xf32>
    tpu.vector_store %arg9[%c1_38, %c0_39, %c0_40], %80 {strides = array<i32>} : memref<2x8x32xf32, #tpu.memory_space<vmem>>, vector<1x8x32xf32>,
    return
  }
  func.func @transform_0(%arg0: i32) -> (i32, i32) {
    %c0_i32 = arith.constant 0 : i32
    %c0_i32_0 = arith.constant 0 : i32
    return %arg0, %c0_i32 : i32, i32
  }
  func.func @transform_1(%arg0: i32) -> (i32, i32, i32) {
    %c0_i32 = arith.constant 0 : i32
    %c0_i32_0 = arith.constant 0 : i32
    %c0_i32_1 = arith.constant 0 : i32
    return %c0_i32, %arg0, %c0_i32_0 : i32, i32, i32
  }
  func.func @transform_2(%arg0: i32) -> (i32, i32, i32) {
    %c0_i32 = arith.constant 0 : i32
    %c0_i32_0 = arith.constant 0 : i32
    %c0_i32_1 = arith.constant 0 : i32
    return %c0_i32, %arg0, %c0_i32_0 : i32, i32, i32
  }
  func.func @transform_3(%arg0: i32) -> (i32, i32) {
    %c0_i32 = arith.constant 0 : i32
    %c0_i32_0 = arith.constant 0 : i32
    %c0_i32_1 = arith.constant 0 : i32
    return %c0_i32, %c0_i32_0 : i32, i32
  }
  func.func @transform_4(%arg0: i32) -> (i32, i32) {
    %c0_i32 = arith.constant 0 : i32
    %c0_i32_0 = arith.constant 0 : i32
    %c0_i32_1 = arith.constant 0 : i32
    return %c0_i32, %c0_i32_0 : i32, i32
  }
  func.func @transform_5(%arg0: i32) -> (i32, i32) {
    %c0_i32 = arith.constant 0 : i32
    %c0_i32_0 = arith.constant 0 : i32
    %c0_i32_1 = arith.constant 0 : i32
    return %c0_i32, %c0_i32_0 : i32, i32
  }
  func.func @transform_6(%arg0: i32) -> (i32, i32) {
    %c0_i32 = arith.constant 0 : i32
    %c0_i32_0 = arith.constant 0 : i32
    %c0_i32_1 = arith.constant 0 : i32
    return %c0_i32, %c0_i32_0 : i32, i32
  }
  func.func @transform_7(%arg0: i32) -> (i32, i32, i32) {
    %c0_i32 = arith.constant 0 : i32
    %c0_i32_0 = arith.constant 0 : i32
    %c0_i32_1 = arith.constant 0 : i32
    return %c0_i32, %arg0, %c0_i32_0 : i32, i32, i32
  }
  func.func @transform_8(%arg0: i32) -> (i32, i32, i32) {
    %c0_i32 = arith.constant 0 : i32
    %c0_i32_0 = arith.constant 0 : i32
    %c0_i32_1 = arith.constant 0 : i32
    return %c0_i32, %arg0, %c0_i32_0 : i32, i32, i32
  }
}

</mosaic_0001>

<llo_original>
// kernel: tpu_custom_call.1
$region0: #{tpu_custom_call.1}
  #allocation0 [shape = 'u32[]', space=smem, size = 0x4, offset = 0x4, fixed_abs, tag = 'smem constant byte address 0x4 - core index']
  #allocation1 [shape = 'u32[144,128]{1,0:T(1,128)}', space=vmem, size = 0x12000, scoped, tag = 'internal scratch']
  %s0 = inlined_call_operand.hbm [shape: f32[8,32], index: 0, kind: input, shape index: {}]
  %s1 = inlined_call_operand.hbm [shape: f32[2,8,32], index: 1, kind: input, shape index: {}]
  %s2 = inlined_call_operand.hbm [shape: f32[2,8,32], index: 2, kind: input, shape index: {}]
  %s3 = inlined_call_operand.hbm [shape: f32[32,128], index: 3, kind: input, shape index: {}]
  %s4 = inlined_call_operand.hbm [shape: f32[32,128], index: 4, kind: input, shape index: {}]
  %s5 = inlined_call_operand.hbm [shape: f32[32,128], index: 5, kind: input, shape index: {}]
  %s6 = inlined_call_operand.hbm [shape: f32[32,128], index: 6, kind: input, shape index: {}]
  %s7 = inlined_call_operand.hbm [shape: f32[2,8,32], index: 7, kind: output, shape index: {0}]
  %s8 = inlined_call_operand.hbm [shape: f32[2,8,32], index: 8, kind: output, shape index: {1}]
  %9 = xla_tuple %s7, %s8
  %s10 = sld [smem:[#allocation0]]
  $region74: #{tpu_custom_call.1} parent=0
    _
  %s12 = ssub.s32 1, %s10
  %s13 = scalar_select 0, %s12, %s10
  $region1: #{tpu_custom_call.1} parent=0
    #allocation2 [shape = 'u8[4096]{0}', space=vmem, size = 0x1000, scoped, tag = 'input window, operand 0, single buffered']
    #allocation3 [shape = 's32[1]{0}', space=sflag, size = 0x4, scoped, tag = 'scoped memory for tpu_custom_call.1']
    #allocation4 [shape = 's32[1]{0}', space=sflag, size = 0x4, scoped, tag = 'scoped memory for tpu_custom_call.1']
    #allocation5 [shape = 'u8[8192]{0}', space=vmem, size = 0x2000, scoped, tag = 'input window, operand 1, single buffered']
    #allocation6 [shape = 's32[1]{0}', space=sflag, size = 0x4, scoped, tag = 'scoped memory for tpu_custom_call.1']
    #allocation7 [shape = 'u8[8192]{0}', space=vmem, size = 0x2000, scoped, tag = 'input window, operand 2, single buffered']
    #allocation8 [shape = 'u8[16384]{0}', space=vmem, size = 0x4000, scoped, tag = 'input window, operand 3, single buffered']
    #allocation9 [shape = 's32[1]{0}', space=sflag, size = 0x4, scoped, tag = 'scoped memory for tpu_custom_call.1']
    #allocation10 [shape = 'u8[16384]{0}', space=vmem, size = 0x4000, scoped, tag = 'input window, operand 4, single buffered']
    #allocation11 [shape = 'u8[16384]{0}', space=vmem, size = 0x4000, scoped, tag = 'input window, operand 5, single buffered']
    #allocation12 [shape = 's32[1]{0}', space=sflag, size = 0x4, scoped, tag = 'scoped memory for tpu_custom_call.1']
    #allocation13 [shape = 'u8[16384]{0}', space=vmem, size = 0x4000, scoped, tag = 'input window, operand 6, single buffered']
    #allocation14 [shape = 'u8[8192]{0}', space=vmem, size = 0x2000, scoped, tag = 'output window, operand 0, single buffered']
    #allocation15 [shape = 'u8[8192]{0}', space=vmem, size = 0x2000, scoped, tag = 'output window, operand 1, single buffered']
    #allocation16 [shape = 's32[1]{0}', space=sflag, size = 0x4, scoped, tag = 'scoped memory for tpu_custom_call.1']
    %14 = vsyncpa [#allocation3], 0
    %15 = vsyncpa [#allocation6], 0
    %16 = vsyncpa [#allocation9], 0
    %17 = vsyncpa [#allocation12], 0
    %18 = vsyncpa [#allocation4], 0
    %19 = vsyncpa [#allocation16], 0
    // Predicated region
    $region2: #{tpu_custom_call.1} parent=1 // pred_check
      _
    $region3: #{tpu_custom_call.1} parent=1 // pred_check_branch
      %21 = sbr.rel (0) target = $region5
    $region4: #{tpu_custom_call.1} parent=1 // pred_region
      %s23 = ssub.s32 128, 128
      %24 = vsyncadd [#allocation3], %s23
      %s26 = sshll.u32 [#allocation2], 4
      %s27 = int_to_ptr.vmem [resolvable:$true] %s26
      %29 = dma.hbm_to_vmem [thread:$0]  %s0, 128, %s27, [#allocation3]
    $region5: #{tpu_custom_call.1} parent=1 // pred_fallthru
      _
    // Predicated region
    $region6: #{tpu_custom_call.1} parent=1 // pred_check
      _
    $region7: #{tpu_custom_call.1} parent=1 // pred_check_branch
      %31 = sbr.rel (0) target = $region9
    $region8: #{tpu_custom_call.1} parent=1 // pred_region
      %s33 = ssub.s32 256, 256
      %34 = vsyncadd [#allocation6], %s33
      %s35 = sshll.u32 [#allocation5], 4
      %s36 = int_to_ptr.vmem [resolvable:$true] %s35
      %41 = dma.hbm_to_vmem [thread:$0]  %s1, 256, %s36, [#allocation6], 128, 128, 8
    $region9: #{tpu_custom_call.1} parent=1 // pred_fallthru
      _
    // Predicated region
    $region10: #{tpu_custom_call.1} parent=1 // pred_check
      _
    $region11: #{tpu_custom_call.1} parent=1 // pred_check_branch
      %43 = sbr.rel (0) target = $region13
    $region12: #{tpu_custom_call.1} parent=1 // pred_region
      %s45 = ssub.s32 256, 256
      %46 = vsyncadd [#allocation6], %s45
      %s47 = sshll.u32 [#allocation7], 4
      %s48 = int_to_ptr.vmem [resolvable:$true] %s47
      %53 = dma.hbm_to_vmem [thread:$0]  %s2, 256, %s48, [#allocation6], 128, 128, 8
    $region13: #{tpu_custom_call.1} parent=1 // pred_fallthru
      _
    // Predicated region
    $region14: #{tpu_custom_call.1} parent=1 // pred_check
      _
    $region15: #{tpu_custom_call.1} parent=1 // pred_check_branch
      %55 = sbr.rel (0) target = $region17
    $region16: #{tpu_custom_call.1} parent=1 // pred_region
      %s57 = ssub.s32 512, 512
      %58 = vsyncadd [#allocation9], %s57
      %s59 = sshll.u32 [#allocation8], 4
      %s60 = int_to_ptr.vmem [resolvable:$true] %s59
      %65 = dma.hbm_to_vmem [thread:$0]  %s3, 512, %s60, [#allocation9], 128, 128, 8
    $region17: #{tpu_custom_call.1} parent=1 // pred_fallthru
      _
    // Predicated region
    $region18: #{tpu_custom_call.1} parent=1 // pred_check
      _
    $region19: #{tpu_custom_call.1} parent=1 // pred_check_branch
      %67 = sbr.rel (0) target = $region21
    $region20: #{tpu_custom_call.1} parent=1 // pred_region
      %s69 = ssub.s32 512, 512
      %70 = vsyncadd [#allocation9], %s69
      %s71 = sshll.u32 [#allocation10], 4
      %s72 = int_to_ptr.vmem [resolvable:$true] %s71
      %77 = dma.hbm_to_vmem [thread:$0]  %s4, 512, %s72, [#allocation9], 128, 128, 8
    $region21: #{tpu_custom_call.1} parent=1 // pred_fallthru
      _
    // Predicated region
    $region22: #{tpu_custom_call.1} parent=1 // pred_check
      _
    $region23: #{tpu_custom_call.1} parent=1 // pred_check_branch
      %79 = sbr.rel (0) target = $region25
    $region24: #{tpu_custom_call.1} parent=1 // pred_region
      %s81 = ssub.s32 512, 512
      %82 = vsyncadd [#allocation12], %s81
      %s83 = sshll.u32 [#allocation11], 4
      %s84 = int_to_ptr.vmem [resolvable:$true] %s83
      %89 = dma.hbm_to_vmem [thread:$0]  %s5, 512, %s84, [#allocation12], 128, 128, 8
    $region25: #{tpu_custom_call.1} parent=1 // pred_fallthru
      _
    // Predicated region
    $region26: #{tpu_custom_call.1} parent=1 // pred_check
      _
    $region27: #{tpu_custom_call.1} parent=1 // pred_check_branch
      %91 = sbr.rel (0) target = $region29
    $region28: #{tpu_custom_call.1} parent=1 // pred_region
      %s93 = ssub.s32 512, 512
      %94 = vsyncadd [#allocation12], %s93
      %s95 = sshll.u32 [#allocation13], 4
      %s96 = int_to_ptr.vmem [resolvable:$true] %s95
      %101 = dma.hbm_to_vmem [thread:$0]  %s6, 512, %s96, [#allocation12], 128, 128, 8
    $region29: #{tpu_custom_call.1} parent=1 // pred_fallthru
      _
    // Predicated region
    $region30: #{tpu_custom_call.1} parent=1 // pred_check
      _
    $region31: #{tpu_custom_call.1} parent=1 // pred_check_branch
      %103 = sbr.rel (0) target = $region33
    $region32: #{tpu_custom_call.1} parent=1 // pred_region
      %104 = dma.done [#allocation3], 128
    $region33: #{tpu_custom_call.1} parent=1 // pred_fallthru
      _
    // Predicated region
    $region34: #{tpu_custom_call.1} parent=1 // pred_check
      _
    $region35: #{tpu_custom_call.1} parent=1 // pred_check_branch
      %106 = sbr.rel (0) target = $region37
    $region36: #{tpu_custom_call.1} parent=1 // pred_region
      %107 = dma.done [#allocation6], 256
    $region37: #{tpu_custom_call.1} parent=1 // pred_fallthru
      _
    // Predicated region
    $region38: #{tpu_custom_call.1} parent=1 // pred_check
      _
    $region39: #{tpu_custom_call.1} parent=1 // pred_check_branch
      %109 = sbr.rel (0) target = $region41
    $region40: #{tpu_custom_call.1} parent=1 // pred_region
      %110 = dma.done [#allocation6], 256
    $region41: #{tpu_custom_call.1} parent=1 // pred_fallthru
      _
    // Predicated region
    $region42: #{tpu_custom_call.1} parent=1 // pred_check
      _
    $region43: #{tpu_custom_call.1} parent=1 // pred_check_branch
      %112 = sbr.rel (0) target = $region45
    $region44: #{tpu_custom_call.1} parent=1 // pred_region
      %113 = dma.done [#allocation9], 512
    $region45: #{tpu_custom_call.1} parent=1 // pred_fallthru
      _
    // Predicated region
    $region46: #{tpu_custom_call.1} parent=1 // pred_check
      _
    $region47: #{tpu_custom_call.1} parent=1 // pred_check_branch
      %115 = sbr.rel (0) target = $region49
    $region48: #{tpu_custom_call.1} parent=1 // pred_region
      %116 = dma.done [#allocation9], 512
    $region49: #{tpu_custom_call.1} parent=1 // pred_fallthru
      _
    // Predicated region
    $region50: #{tpu_custom_call.1} parent=1 // pred_check
      _
    $region51: #{tpu_custom_call.1} parent=1 // pred_check_branch
      %118 = sbr.rel (0) target = $region53
    $region52: #{tpu_custom_call.1} parent=1 // pred_region
      %119 = dma.done [#allocation12], 512
    $region53: #{tpu_custom_call.1} parent=1 // pred_fallthru
      _
    // Predicated region
    $region54: #{tpu_custom_call.1} parent=1 // pred_check
      _
    $region55: #{tpu_custom_call.1} parent=1 // pred_check_branch
      %121 = sbr.rel (0) target = $region57
    $region56: #{tpu_custom_call.1} parent=1 // pred_region
      %122 = dma.done [#allocation12], 512
    $region57: #{tpu_custom_call.1} parent=1 // pred_fallthru
      _
    %v123 = vld [vmem:[#allocation2] sm:$0xff]
    %v124 = vld [vmem:[#allocation5] sm:$0xff]
    %v125 = vld [vmem:[#allocation7] sm:$0xff]
    %v126 = vld [vmem:[#allocation8] sm:$0xff]
    %v127 = vld [vmem:[#allocation8 + $0x8] sm:$0xff]
    %v128 = vld [vmem:[#allocation8 + $0x10] sm:$0xff]
    %v129 = vld [vmem:[#allocation8 + $0x18] sm:$0xff]
    %v130 = vld [vmem:[#allocation11] sm:$0xff]
    %v131 = vld [vmem:[#allocation11 + $0x8] sm:$0xff]
    %v132 = vld [vmem:[#allocation11 + $0x10] sm:$0xff]
    %v133 = vld [vmem:[#allocation11 + $0x18] sm:$0xff]
    %vm134 = vcmask 261120
    %v136 = vsel %vm134, %v124, 0
    %138 = vmatprep.subr.mxu0 0.0
    %139 = vmatpush1.msra.mxu0 %v130
    %140 = vmatprep.subr.mxu0 0.0
    %141 = vmatpush1.msra.mxu0 %v131
    %142 = vmatprep.subr.mxu0 0.0
    %143 = vmatpush1.msra.mxu0 %v132
    %144 = vmatprep.subr.mxu0 0.0
    %145 = vmatpush1.msra.mxu0 %v133
    %146 = vmatprep.subr.mxu0 0.0
    %147 = vmatpush1.msra.mxu0 0.0
    %148 = vmatprep.subr.mxu0 0.0
    %149 = vmatpush1.msra.mxu0 0.0
    %150 = vmatprep.subr.mxu0 0.0
    %151 = vmatpush1.msra.mxu0 0.0
    %152 = vmatprep.subr.mxu0 0.0
    %153 = vmatpush1.msra.mxu0 0.0
    %154 = vmatprep.subr.mxu0 0.0
    %155 = vmatpush1.msra.mxu0 0.0
    %156 = vmatprep.subr.mxu0 0.0
    %157 = vmatpush1.msra.mxu0 0.0
    %158 = vmatprep.subr.mxu0 0.0
    %159 = vmatpush1.msra.mxu0 0.0
    %160 = vmatprep.subr.mxu0 0.0
    %161 = vmatpush1.msra.mxu0 0.0
    %162 = vmatprep.subr.mxu0 0.0
    %163 = vmatpush1.msra.mxu0 0.0
    %164 = vmatprep.subr.mxu0 0.0
    %165 = vmatpush1.msra.mxu0 0.0
    %166 = vmatprep.subr.mxu0 0.0
    %167 = vmatpush1.msra.mxu0 0.0
    %168 = vmatprep.subr.mxu0 0.0
    %169 = vmatpush1.msra.mxu0 0.0
    %170 = vmatprep.subr.mxu0 0.0
    %171 = vmatpush1.msra.mxu0 0.0
    %172 = vmatprep.subr.mxu0 0.0
    %173 = vmatpush1.msra.mxu0 0.0
    %174 = vmatprep.subr.mxu0 0.0
    %175 = vmatpush1.msra.mxu0 0.0
    %176 = vmatprep.subr.mxu0 0.0
    %177 = vmatpush1.msra.mxu0 0.0
    %178 = vmatprep.subr.mxu0 0.0
    %179 = vmatpush1.msra.mxu0 0.0
    %180 = vmatprep.subr.mxu0 0.0
    %181 = vmatpush1.msra.mxu0 0.0
    %182 = vmatprep.subr.mxu0 0.0
    %183 = vmatpush1.msra.mxu0 0.0
    %184 = vmatprep.subr.mxu0 0.0
    %185 = vmatpush1.msra.mxu0 0.0
    %186 = vmatprep.subr.mxu0 0.0
    %187 = vmatpush1.msra.mxu0 0.0
    %188 = vmatprep.subr.mxu0 0.0
    %189 = vmatpush1.msra.mxu0 0.0
    %190 = vmatprep.subr.mxu0 0.0
    %191 = vmatpush1.msra.mxu0 0.0
    %192 = vmatprep.subr.mxu0 0.0
    %193 = vmatpush1.msra.mxu0 0.0
    %194 = vmatprep.subr.mxu0 0.0
    %195 = vmatpush1.msra.mxu0 0.0
    %196 = vmatprep.subr.mxu0 0.0
    %197 = vmatpush1.msra.mxu0 0.0
    %198 = vmatprep.subr.mxu0 0.0
    %199 = vmatpush1.msra.mxu0 0.0
    %200 = vmatprep.subr.mxu0 0.0
    %201 = vmatpush1.msra.mxu0 0.0
    %202 = vmatprep.mubr.f32.mxu0 0.0
    %203 = vmatmul.mubr.f32.gmra.mrb[0].mxu0 %v136
    %v204 = vpop.f32.mrb[0].mxu0
    %v205 = vadd.f32 0.0, %v204
    %v206 = vpop.f32.mrb[0].mxu0
    %207 = vdwg.mxu0
    %v209 = vsel %vm134, %v123, 0
    %211 = vmatprep.subr.mxu0 0.0
    %212 = vmatpush1.msra.mxu0 %v126
    %213 = vmatprep.subr.mxu0 0.0
    %214 = vmatpush1.msra.mxu0 %v127
    %215 = vmatprep.subr.mxu0 0.0
    %216 = vmatpush1.msra.mxu0 %v128
    %217 = vmatprep.subr.mxu0 0.0
    %218 = vmatpush1.msra.mxu0 %v129
    %219 = vmatprep.subr.mxu0 0.0
    %220 = vmatpush1.msra.mxu0 0.0
    %221 = vmatprep.subr.mxu0 0.0
    %222 = vmatpush1.msra.mxu0 0.0
    %223 = vmatprep.subr.mxu0 0.0
    %224 = vmatpush1.msra.mxu0 0.0
    %225 = vmatprep.subr.mxu0 0.0
    %226 = vmatpush1.msra.mxu0 0.0
    %227 = vmatprep.subr.mxu0 0.0
    %228 = vmatpush1.msra.mxu0 0.0
    %229 = vmatprep.subr.mxu0 0.0
    %230 = vmatpush1.msra.mxu0 0.0
    %231 = vmatprep.subr.mxu0 0.0
    %232 = vmatpush1.msra.mxu0 0.0
    %233 = vmatprep.subr.mxu0 0.0
    %234 = vmatpush1.msra.mxu0 0.0
    %235 = vmatprep.subr.mxu0 0.0
    %236 = vmatpush1.msra.mxu0 0.0
    %237 = vmatprep.subr.mxu0 0.0
    %238 = vmatpush1.msra.mxu0 0.0
    %239 = vmatprep.subr.mxu0 0.0
    %240 = vmatpush1.msra.mxu0 0.0
    %241 = vmatprep.subr.mxu0 0.0
    %242 = vmatpush1.msra.mxu0 0.0
    %243 = vmatprep.subr.mxu0 0.0
    %244 = vmatpush1.msra.mxu0 0.0
    %245 = vmatprep.subr.mxu0 0.0
    %246 = vmatpush1.msra.mxu0 0.0
    %247 = vmatprep.subr.mxu0 0.0
    %248 = vmatpush1.msra.mxu0 0.0
    %249 = vmatprep.subr.mxu0 0.0
    %250 = vmatpush1.msra.mxu0 0.0
    %251 = vmatprep.subr.mxu0 0.0
    %252 = vmatpush1.msra.mxu0 0.0
    %253 = vmatprep.subr.mxu0 0.0
    %254 = vmatpush1.msra.mxu0 0.0
    %255 = vmatprep.subr.mxu0 0.0
    %256 = vmatpush1.msra.mxu0 0.0
    %257 = vmatprep.subr.mxu0 0.0
    %258 = vmatpush1.msra.mxu0 0.0
    %259 = vmatprep.subr.mxu0 0.0
    %260 = vmatpush1.msra.mxu0 0.0
    %261 = vmatprep.subr.mxu0 0.0
    %262 = vmatpush1.msra.mxu0 0.0
    %263 = vmatprep.subr.mxu0 0.0
    %264 = vmatpush1.msra.mxu0 0.0
    %265 = vmatprep.subr.mxu0 0.0
    %266 = vmatpush1.msra.mxu0 0.0
    %267 = vmatprep.subr.mxu0 0.0
    %268 = vmatpush1.msra.mxu0 0.0
    %269 = vmatprep.subr.mxu0 0.0
    %270 = vmatpush1.msra.mxu0 0.0
    %271 = vmatprep.subr.mxu0 0.0
    %272 = vmatpush1.msra.mxu0 0.0
    %273 = vmatprep.subr.mxu0 0.0
    %274 = vmatpush1.msra.mxu0 0.0
    %275 = vmatprep.mubr.f32.mxu0 0.0
    %276 = vmatmul.mubr.f32.gmra.mrb[0].mxu0 %v209
    %v277 = vpop.f32.mrb[0].mxu0
    %v278 = vadd.f32 %v205, %v277
    %v279 = vpop.f32.mrb[0].mxu0
    %280 = vdwg.mxu0
    %v281 = vxor.u32 %v278, 2147483648
    %v282 = vmul.f32 %v281, 1.442695
    %v283 = vpow.pop %v282
    %v284 = vadd.f32 %v283, 1.0
    %v285 = vrcp.pop %v284
    %v286 = vmul.f32 1.0, %v285
    %288 = vrot.lane.b32.xlu0 %v125, 32
    %v289 = vpop.permute.xlu0 %288
    %v291 = vmul.f32 %v286, %v289
    %v292 = vtanh.pop %v278
    %294 = vrot.lane.b32.xlu0 %v292, 64
    %v295 = vpop.permute.xlu0 %294
    %v297 = vmul.f32 %v286, %v295
    %299 = vrot.lane.b32.xlu0 %v297, 32
    %v300 = vpop.permute.xlu0 %299
    %v302 = vadd.f32 %v291, %v300
    %v303 = vtanh.pop %v302
    %305 = vrot.lane.b32.xlu0 %v303, 64
    %v306 = vpop.permute.xlu0 %305
    %v308 = vmul.f32 %v286, %v306
    %310 = vrot.lane.b32.xlu0 %v308, 32
    %v311 = vpop.permute.xlu0 %310
    %313 = vst.msk [vmem:[#allocation14] sm:$0xff] %vm134, %v311
    %315 = vrot.lane.b32.xlu0 %v302, 96
    %v316 = vpop.permute.xlu0 %315
    %318 = vst.msk [vmem:[#allocation15] sm:$0xff] %vm134, %v316
    %s319 = scalar_lea.vmem [#allocation5], 8
    %v320 = vld [vmem:[%s319] sm:$0xff]
    %s321 = scalar_lea.vmem [#allocation7], 8
    %v322 = vld [vmem:[%s321] sm:$0xff]
    %v323 = vld [vmem:[#allocation10] sm:$0xff]
    %v324 = vld [vmem:[#allocation10 + $0x8] sm:$0xff]
    %v325 = vld [vmem:[#allocation10 + $0x10] sm:$0xff]
    %v326 = vld [vmem:[#allocation10 + $0x18] sm:$0xff]
    %v327 = vld [vmem:[#allocation13] sm:$0xff]
    %v328 = vld [vmem:[#allocation13 + $0x8] sm:$0xff]
    %v329 = vld [vmem:[#allocation13 + $0x10] sm:$0xff]
    %v330 = vld [vmem:[#allocation13 + $0x18] sm:$0xff]
    %v332 = vsel %vm134, %v320, 0
    %334 = vmatprep.subr.mxu0 0.0
    %335 = vmatpush1.msra.mxu0 %v327
    %336 = vmatprep.subr.mxu0 0.0
    %337 = vmatpush1.msra.mxu0 %v328
    %338 = vmatprep.subr.mxu0 0.0
    %339 = vmatpush1.msra.mxu0 %v329
    %340 = vmatprep.subr.mxu0 0.0
    %341 = vmatpush1.msra.mxu0 %v330
    %342 = vmatprep.subr.mxu0 0.0
    %343 = vmatpush1.msra.mxu0 0.0
    %344 = vmatprep.subr.mxu0 0.0
    %345 = vmatpush1.msra.mxu0 0.0
    %346 = vmatprep.subr.mxu0 0.0
    %347 = vmatpush1.msra.mxu0 0.0
    %348 = vmatprep.subr.mxu0 0.0
    %349 = vmatpush1.msra.mxu0 0.0
    %350 = vmatprep.subr.mxu0 0.0
    %351 = vmatpush1.msra.mxu0 0.0
    %352 = vmatprep.subr.mxu0 0.0
    %353 = vmatpush1.msra.mxu0 0.0
    %354 = vmatprep.subr.mxu0 0.0
    %355 = vmatpush1.msra.mxu0 0.0
    %356 = vmatprep.subr.mxu0 0.0
    %357 = vmatpush1.msra.mxu0 0.0
    %358 = vmatprep.subr.mxu0 0.0
    %359 = vmatpush1.msra.mxu0 0.0
    %360 = vmatprep.subr.mxu0 0.0
    %361 = vmatpush1.msra.mxu0 0.0
    %362 = vmatprep.subr.mxu0 0.0
    %363 = vmatpush1.msra.mxu0 0.0
    %364 = vmatprep.subr.mxu0 0.0
    %365 = vmatpush1.msra.mxu0 0.0
    %366 = vmatprep.subr.mxu0 0.0
    %367 = vmatpush1.msra.mxu0 0.0
    %368 = vmatprep.subr.mxu0 0.0
    %369 = vmatpush1.msra.mxu0 0.0
    %370 = vmatprep.subr.mxu0 0.0
    %371 = vmatpush1.msra.mxu0 0.0
    %372 = vmatprep.subr.mxu0 0.0
    %373 = vmatpush1.msra.mxu0 0.0
    %374 = vmatprep.subr.mxu0 0.0
    %375 = vmatpush1.msra.mxu0 0.0
    %376 = vmatprep.subr.mxu0 0.0
    %377 = vmatpush1.msra.mxu0 0.0
    %378 = vmatprep.subr.mxu0 0.0
    %379 = vmatpush1.msra.mxu0 0.0
    %380 = vmatprep.subr.mxu0 0.0
    %381 = vmatpush1.msra.mxu0 0.0
    %382 = vmatprep.subr.mxu0 0.0
    %383 = vmatpush1.msra.mxu0 0.0
    %384 = vmatprep.subr.mxu0 0.0
    %385 = vmatpush1.msra.mxu0 0.0
    %386 = vmatprep.subr.mxu0 0.0
    %387 = vmatpush1.msra.mxu0 0.0
    %388 = vmatprep.subr.mxu0 0.0
    %389 = vmatpush1.msra.mxu0 0.0
    %390 = vmatprep.subr.mxu0 0.0
    %391 = vmatpush1.msra.mxu0 0.0
    %392 = vmatprep.subr.mxu0 0.0
    %393 = vmatpush1.msra.mxu0 0.0
    %394 = vmatprep.subr.mxu0 0.0
    %395 = vmatpush1.msra.mxu0 0.0
    %396 = vmatprep.subr.mxu0 0.0
    %397 = vmatpush1.msra.mxu0 0.0
    %398 = vmatprep.mubr.f32.mxu0 0.0
    %399 = vmatmul.mubr.f32.gmra.mrb[0].mxu0 %v332
    %v400 = vpop.f32.mrb[0].mxu0
    %v401 = vadd.f32 0.0, %v400
    %v402 = vpop.f32.mrb[0].mxu0
    %403 = vdwg.mxu0
    %v404 = vsel %vm134, %v311, 0
    %406 = vmatprep.subr.mxu0 0.0
    %407 = vmatpush1.msra.mxu0 %v323
    %408 = vmatprep.subr.mxu0 0.0
    %409 = vmatpush1.msra.mxu0 %v324
    %410 = vmatprep.subr.mxu0 0.0
    %411 = vmatpush1.msra.mxu0 %v325
    %412 = vmatprep.subr.mxu0 0.0
    %413 = vmatpush1.msra.mxu0 %v326
    %414 = vmatprep.subr.mxu0 0.0
    %415 = vmatpush1.msra.mxu0 0.0
    %416 = vmatprep.subr.mxu0 0.0
    %417 = vmatpush1.msra.mxu0 0.0
    %418 = vmatprep.subr.mxu0 0.0
    %419 = vmatpush1.msra.mxu0 0.0
    %420 = vmatprep.subr.mxu0 0.0
    %421 = vmatpush1.msra.mxu0 0.0
    %422 = vmatprep.subr.mxu0 0.0
    %423 = vmatpush1.msra.mxu0 0.0
    %424 = vmatprep.subr.mxu0 0.0
    %425 = vmatpush1.msra.mxu0 0.0
    %426 = vmatprep.subr.mxu0 0.0
    %427 = vmatpush1.msra.mxu0 0.0
    %428 = vmatprep.subr.mxu0 0.0
    %429 = vmatpush1.msra.mxu0 0.0
    %430 = vmatprep.subr.mxu0 0.0
    %431 = vmatpush1.msra.mxu0 0.0
    %432 = vmatprep.subr.mxu0 0.0
    %433 = vmatpush1.msra.mxu0 0.0
    %434 = vmatprep.subr.mxu0 0.0
    %435 = vmatpush1.msra.mxu0 0.0
    %436 = vmatprep.subr.mxu0 0.0
    %437 = vmatpush1.msra.mxu0 0.0
    %438 = vmatprep.subr.mxu0 0.0
    %439 = vmatpush1.msra.mxu0 0.0
    %440 = vmatprep.subr.mxu0 0.0
    %441 = vmatpush1.msra.mxu0 0.0
    %442 = vmatprep.subr.mxu0 0.0
    %443 = vmatpush1.msra.mxu0 0.0
    %444 = vmatprep.subr.mxu0 0.0
    %445 = vmatpush1.msra.mxu0 0.0
    %446 = vmatprep.subr.mxu0 0.0
    %447 = vmatpush1.msra.mxu0 0.0
    %448 = vmatprep.subr.mxu0 0.0
    %449 = vmatpush1.msra.mxu0 0.0
    %450 = vmatprep.subr.mxu0 0.0
    %451 = vmatpush1.msra.mxu0 0.0
    %452 = vmatprep.subr.mxu0 0.0
    %453 = vmatpush1.msra.mxu0 0.0
    %454 = vmatprep.subr.mxu0 0.0
    %455 = vmatpush1.msra.mxu0 0.0
    %456 = vmatprep.subr.mxu0 0.0
    %457 = vmatpush1.msra.mxu0 0.0
    %458 = vmatprep.subr.mxu0 0.0
    %459 = vmatpush1.msra.mxu0 0.0
    %460 = vmatprep.subr.mxu0 0.0
    %461 = vmatpush1.msra.mxu0 0.0
    %462 = vmatprep.subr.mxu0 0.0
    %463 = vmatpush1.msra.mxu0 0.0
    %464 = vmatprep.subr.mxu0 0.0
    %465 = vmatpush1.msra.mxu0 0.0
    %466 = vmatprep.subr.mxu0 0.0
    %467 = vmatpush1.msra.mxu0 0.0
    %468 = vmatprep.subr.mxu0 0.0
    %469 = vmatpush1.msra.mxu0 0.0
    %470 = vmatprep.mubr.f32.mxu0 0.0
    %471 = vmatmul.mubr.f32.gmra.mrb[0].mxu0 %v404
    %v472 = vpop.f32.mrb[0].mxu0
    %v473 = vadd.f32 %v401, %v472
    %v474 = vpop.f32.mrb[0].mxu0
    %475 = vdwg.mxu0
    %v476 = vxor.u32 %v473, 2147483648
    %v477 = vmul.f32 %v476, 1.442695
    %v478 = vpow.pop %v477
    %v479 = vadd.f32 %v478, 1.0
    %v480 = vrcp.pop %v479
    %v481 = vmul.f32 1.0, %v480
    %483 = vrot.lane.b32.xlu0 %v322, 32
    %v484 = vpop.permute.xlu0 %483
    %v486 = vmul.f32 %v481, %v484
    %v487 = vtanh.pop %v473
    %489 = vrot.lane.b32.xlu0 %v487, 64
    %v490 = vpop.permute.xlu0 %489
    %v492 = vmul.f32 %v481, %v490
    %494 = vrot.lane.b32.xlu0 %v492, 32
    %v495 = vpop.permute.xlu0 %494
    %v497 = vadd.f32 %v486, %v495
    %v498 = vtanh.pop %v497
    %500 = vrot.lane.b32.xlu0 %v498, 64
    %v501 = vpop.permute.xlu0 %500
    %v503 = vmul.f32 %v481, %v501
    %505 = vrot.lane.b32.xlu0 %v503, 32
    %v506 = vpop.permute.xlu0 %505
    %s508 = scalar_lea.vmem [#allocation14], 8
    %509 = vst.msk [vmem:[%s508] sm:$0xff] %vm134, %v506
    %511 = vrot.lane.b32.xlu0 %v497, 96
    %v512 = vpop.permute.xlu0 %511
    %s514 = scalar_lea.vmem [#allocation15], 8
    %515 = vst.msk [vmem:[%s514] sm:$0xff] %vm134, %v512
    // Predicated region
    $region58: #{tpu_custom_call.1} parent=1 // pred_check
      _
    $region59: #{tpu_custom_call.1} parent=1 // pred_check_branch
      %517 = sbr.rel (0) target = $region61
    $region60: #{tpu_custom_call.1} parent=1 // pred_region
      %s519 = ssub.s32 256, 256
      %520 = vsyncadd [#allocation4], %s519
      %s521 = sshll.u32 [#allocation14], 4
      %s522 = int_to_ptr.vmem [resolvable:$true] %s521
      %527 = dma.vmem_to_hbm [thread:$0]  %s522, 256, %s7, [#allocation4], 128, 128, 8
    $region61: #{tpu_custom_call.1} parent=1 // pred_fallthru
      _
    // Predicated region
    $region62: #{tpu_custom_call.1} parent=1 // pred_check
      _
    $region63: #{tpu_custom_call.1} parent=1 // pred_check_branch
      %529 = sbr.rel (0) target = $region65
    $region64: #{tpu_custom_call.1} parent=1 // pred_region
      %s531 = ssub.s32 256, 256
      %532 = vsyncadd [#allocation16], %s531
      %s533 = sshll.u32 [#allocation15], 4
      %s534 = int_to_ptr.vmem [resolvable:$true] %s533
      %539 = dma.vmem_to_hbm [thread:$0]  %s534, 256, %s8, [#allocation16], 128, 128, 8
    $region65: #{tpu_custom_call.1} parent=1 // pred_fallthru
      _
    // Predicated region
    $region66: #{tpu_custom_call.1} parent=1 // pred_check
      _
    $region67: #{tpu_custom_call.1} parent=1 // pred_check_branch
      %541 = sbr.rel (0) target = $region69
    $region68: #{tpu_custom_call.1} parent=1 // pred_region
      %542 = dma.done [#allocation4], 256
    $region69: #{tpu_custom_call.1} parent=1 // pred_fallthru
      _
    // Predicated region
    $region70: #{tpu_custom_call.1} parent=1 // pred_check
      _
    $region71: #{tpu_custom_call.1} parent=1 // pred_check_branch
      %544 = sbr.rel (0) target = $region73
    $region72: #{tpu_custom_call.1} parent=1 // pred_region
      %545 = dma.done [#allocation16], 256
    $region73: #{tpu_custom_call.1} parent=1 // pred_fallthru
      _
    %546 = vsyncpa [#allocation3], 1
    %547 = vsyncpa [#allocation6], 1
    %548 = vsyncpa [#allocation9], 1
    %549 = vsyncpa [#allocation12], 1
    %550 = vsyncpa [#allocation4], 1
    %551 = vsyncpa [#allocation16], 1

</llo_original>
